<compile_context>
chip_gen: v7x
topology: tpu7x:2x2x1
jax: 0.10.0
libtpu: 0.0.40
codegen_flags: <defaults>
</compile_context>

<pallas_src>
import math
from functools import partial

import numpy as np
import jax
import jax.numpy as jnp
from jax.experimental import pallas as pl
from jax.experimental.pallas import tpu as pltpu


# ---------------------------------------------------------------------------
# Host-side glue: letter -> integer index (strings cannot enter the TPU).
# ---------------------------------------------------------------------------
_RNA_LETTERS = ["A", "U", "T", "G", "C", "N"]
_RNA_INDEX = [0, 1, 1, 2, 3, 4]          # T shares U's row; N is index 4
_RNA_N_IDX = 4
_PROT_LETTERS = ["A", "R", "N", "D", "C", "Q", "E", "G", "H", "I",
                 "L", "K", "M", "F", "P", "S", "T", "W", "Y", "V"]


def _make_lut(molecule: str):
    """256-entry ASCII -> row-index LUT (vectorized host mapping)."""
    assert molecule in ("rna", "protein")
    lut = np.full(256, -1, dtype=np.int32)
    if molecule == "rna":
        for ch, i in zip(_RNA_LETTERS, _RNA_INDEX):
            lut[ord(ch)] = i
        return lut, 4, _RNA_N_IDX
    for i, ch in enumerate(_PROT_LETTERS):
        lut[ord(ch)] = i
    return lut, 20, -1


# ---------------------------------------------------------------------------
# Pallas kernel: pure VPU compare/select, lane-dense in and out.
#   chan_ref : [1, L]      int32  channel pattern (0..D-1 tiled across lanes),
#                                 constant block -> resident, not re-DMA'd
#   idx_ref  : [TILE_R, L] int8   per-position index repeated D times so it
#                                 lines up 1:1 with output lanes
#   out_ref  : [TILE_R, L] out_dtype (bf16 default)
# ---------------------------------------------------------------------------
def _onehot_kernel(chan_ref, idx_ref, out_ref, *, is_rna: bool, n_idx: int):
    idx = idx_ref[...].astype(jnp.int32)                 # int8 -> int32 widen
    chan = chan_ref[...]                                 # [1, L] int32 (bcast)
    onehot = (idx == chan).astype(out_ref.dtype)         # VPU compare + cast
    if is_rna:
        onehot = jnp.where(idx == n_idx,
                           jnp.asarray(0.25, dtype=out_ref.dtype),
                           onehot)                       # 'N' row -> 0.25s
    out_ref[...] = onehot                                # full-lane vst


@partial(jax.jit,
         static_argnames=("d", "pos_per_row", "is_rna", "n_idx",
                          "tile_r", "out_dtype"))
def _encode_packed(idx_raw, *, d, pos_per_row, is_rna, n_idx, tile_r,
                   out_dtype):
    rows_pad = idx_raw.shape[0]
    lanes = pos_per_row * d

    # On-device lane expansion (keeps PCIe at 1 B/position).
    idx_expanded = jnp.repeat(idx_raw, d, axis=1)        # [rows_pad, lanes] i8
    # 0..D-1 tiled across the lane dim; constant-folded by XLA, no transfer.
    chan = jnp.tile(jnp.arange(d, dtype=jnp.int32),
                    pos_per_row).reshape(1, lanes)

    kernel = partial(_onehot_kernel, is_rna=is_rna, n_idx=n_idx)
    return pl.pallas_call(
        kernel,
        out_shape=jax.ShapeDtypeStruct((rows_pad, lanes), out_dtype),
        grid=(rows_pad // tile_r,),
        in_specs=[
            pl.BlockSpec((1, lanes), lambda r: (0, 0)),       # chan (resident)
            pl.BlockSpec((tile_r, lanes), lambda r: (r, 0)),  # packed indices
        ],
        out_specs=pl.BlockSpec((tile_r, lanes), lambda r: (r, 0)),
        compiler_params=pltpu.CompilerParams(
            dimension_semantics=("parallel",),
            vmem_limit_bytes=32 * 1024 * 1024),
    )(chan, idx_expanded)


def _pick_tiling(rows: int, max_tile: int):
    """TILE_R (multiple of 32 for the int8 tile rule) with bounded padding."""
    rows32 = ((rows + 31) // 32) * 32
    if rows32 <= max_tile:
        return rows32, rows32                    # single grid step, minimal pad
    n_steps = -(-rows // max_tile)
    tile_r = ((-(-rows // n_steps) + 31) // 32) * 32
    return tile_r, n_steps * tile_r              # pad <= 32*n_steps rows


def one_hot_encode(seq: str, molecule: str, out_dtype=jnp.bfloat16):
    """Pallas-backed equivalent of OneHotEncoder(molecule).forward(seq)."""
    lut, d, n_idx = _make_lut(molecule)

    # Vectorized string -> index mapping (host-side).
    codes = np.frombuffer(seq.encode("ascii"), dtype=np.uint8)
    idx = lut[codes]
    if np.any(idx < 0):
        raise KeyError(f"invalid letter for molecule '{molecule}'")
    s = idx.shape[0]

    # Lane-dense packing: 32 positions per packed row -> last dim = 32*D,
    # a multiple of 128 for D in {4, 20}.
    pos_per_row = 128 // math.gcd(d, 128)          # 32 for both molecules
    rows = -(-s // pos_per_row)
    max_tile = 4096 if d == 4 else 2048            # safe on v7x's 64 MiB VMEM
    tile_r, rows_pad = _pick_tiling(rows, max_tile)
    s_pad = rows_pad * pos_per_row

    # Only raw int8 indices cross PCIe (1 B/position).
    idx_pad = np.zeros(s_pad, dtype=np.int8)
    idx_pad[:s] = idx
    idx_raw = idx_pad.reshape(rows_pad, pos_per_row)

    out_packed = _encode_packed(
        jnp.asarray(idx_raw),
        d=d, pos_per_row=pos_per_row,
        is_rna=(molecule == "rna"), n_idx=n_idx,
        tile_r=tile_r, out_dtype=out_dtype)

    # Packed [rows_pad, 32*D] is row-major identical to [rows_pad*32, D]:
    # reshape + drop padding rows (free layout plumbing in the wrapper).
    return out_packed.reshape(-1, d)[:s]


# ---------------------------------------------------------------------------
# Pure-numpy reference (mirrors the PyTorch module's forward).
# ---------------------------------------------------------------------------
def reference_encode(seq, molecule: str):
    if molecule == "rna":
        table = {"A": [1, 0, 0, 0], "U": [0, 1, 0, 0], "T": [0, 1, 0, 0],
                 "G": [0, 0, 1, 0], "C": [0, 0, 0, 1], "N": [0.25] * 4}
    else:
        eye = np.eye(20)
        table = {aa: eye[n, :] for n, aa in enumerate(_PROT_LETTERS)}
    return np.stack([np.asarray(table[c], dtype=np.float32) for c in seq])


if __name__ == "__main__":
    # Deterministic inputs: fixed RNA (seq=8) and protein (seq=10) sequences;
    # PRNGKey(0) only picks the letters deterministically.
    key = jax.random.PRNGKey(0)
    k_rna, k_prot = jax.random.split(key)

    rna_idx = jax.random.randint(k_rna, (8,), 0, len(_RNA_LETTERS))
    prot_idx = jax.random.randint(k_prot, (10,), 0, len(_PROT_LETTERS))
    rna_seq = "".join(_RNA_LETTERS[int(i)] for i in np.asarray(rna_idx))
    prot_seq = "".join(_PROT_LETTERS[int(i)] for i in np.asarray(prot_idx))

    # RNA: [8, 4] bf16 default (exact for {0, 0.25, 1}).
    out_rna = one_hot_encode(rna_seq, "rna")
    jax.block_until_ready(out_rna)
    np.testing.assert_allclose(
        np.asarray(out_rna).astype(np.float32),
        reference_encode(rna_seq, "rna"), rtol=0, atol=0)

    # Protein: [10, 20] bf16 default.
    out_prot = one_hot_encode(prot_seq, "protein")
    jax.block_until_ready(out_prot)
    np.testing.assert_allclose(
        np.asarray(out_prot).astype(np.float32),
        reference_encode(prot_seq, "protein"), rtol=0, atol=0)

    # Explicit float32 output path still available (matches reference dtype).
    out_rna_f32 = one_hot_encode(rna_seq, "rna", out_dtype=jnp.float32)
    jax.block_until_ready(out_rna_f32)
    np.testing.assert_allclose(
        np.asarray(out_rna_f32), reference_encode(rna_seq, "rna"),
        rtol=0, atol=0)

    print("KERNEL_OK")
</pallas_src>

<mosaic_0001>
module attributes {stable_mosaic.version = 11 : i64} {
  func.func @_onehot_kernel(%arg0: i32, %arg1: memref<1x128xi32, #tpu.memory_space<vmem>>, %arg2: memref<32x128xi8, #tpu.memory_space<vmem>>, %arg3: memref<32x128xbf16, #tpu.memory_space<vmem>>) attributes {dimension_semantics = [#tpu.dimension_semantics<parallel>], iteration_bounds = array<i64: 1>, scalar_prefetch = 0 : i64, scratch_operands = 0 : i64, tpu.core_type = #tpu.core_type<tc>, window_params = [{pipeline_mode = #tpu.pipeline_mode<synchronous>, transform_indices = @transform_0, window_bounds = array<i64: 1, 128>}, {transform_indices = @transform_1, window_bounds = array<i64: 32, 128>}, {transform_indices = @transform_2, window_bounds = array<i64: 32, 128>}]} {
    %c0 = arith.constant 0 : index
    %c0_0 = arith.constant 0 : index
    %0 = vector.load %arg2[%c0, %c0_0] : memref<32x128xi8, #tpu.memory_space<vmem>>, vector<32x128xi8>
    %1 = arith.extsi %0 : vector<32x128xi8> to vector<32x128xi32>
    %c0_1 = arith.constant 0 : index
    %c0_2 = arith.constant 0 : index
    %2 = vector.load %arg1[%c0_1, %c0_2] : memref<1x128xi32, #tpu.memory_space<vmem>>, vector<1x128xi32>
    %3 = vector.broadcast %2 : vector<1x128xi32> to vector<32x128xi32>
    %4 = arith.cmpi eq, %1, %3 : vector<32x128xi32>
    %5 = arith.extui %4 : vector<32x128xi1> to vector<32x128xi32>
    %6 = arith.sitofp %5 : vector<32x128xi32> to vector<32x128xf32>
    %7 = arith.truncf %6 : vector<32x128xf32> to vector<32x128xbf16>
    %c4_i32 = arith.constant 4 : i32
    %8 = vector.broadcast %c4_i32 : i32 to vector<32x128xi32>
    %9 = arith.cmpi eq, %1, %8 : vector<32x128xi32>
    %cst = arith.constant 2.500000e-01 : bf16
    %10 = vector.broadcast %cst : bf16 to vector<32x128xbf16>
    %11 = arith.select %9, %10, %7 : vector<32x128xi1>, vector<32x128xbf16>
    %c0_3 = arith.constant 0 : index
    %c0_4 = arith.constant 0 : index
    %12 = vector.load %arg3[%c0_3, %c0_4] : memref<32x128xbf16, #tpu.memory_space<vmem>>, vector<32x128xbf16>
    tpu.vector_store %arg3[%c0_3, %c0_4], %11 {strides = array<i32>} : memref<32x128xbf16, #tpu.memory_space<vmem>>, vector<32x128xbf16>,
    return
  }
  func.func @transform_0(%arg0: i32) -> (i32, i32) {
    %c0_i32 = arith.constant 0 : i32
    %c0_i32_0 = arith.constant 0 : i32
    %c0_i32_1 = arith.constant 0 : i32
    return %c0_i32, %c0_i32_0 : i32, i32
  }
  func.func @transform_1(%arg0: i32) -> (i32, i32) {
    %c0_i32 = arith.constant 0 : i32
    %c0_i32_0 = arith.constant 0 : i32
    return %arg0, %c0_i32 : i32, i32
  }
  func.func @transform_2(%arg0: i32) -> (i32, i32) {
    %c0_i32 = arith.constant 0 : i32
    %c0_i32_0 = arith.constant 0 : i32
    return %arg0, %c0_i32 : i32, i32
  }
}

</mosaic_0001>

<llo_original>
// kernel: tile.9
$region0: #{tile.9}
  %s0 = inlined_call_operand.vmem [shape: s32[32,4], index: 0, kind: input, shape index: {}]
  %s1 = inlined_call_operand.vmem [shape: s32[1,128], index: 1, kind: output, shape index: {}]
  $region1: #{tile.9} parent=0
    #allocation0 [shape = 'u8[4096]{0}', space=vmem, size = 0x1000, scoped, tag = 'scoped mem for output reshape']
    %v2 = vld [vmem:[%s0] sm:$0x1]
    %vm3 = vcmask 31744
    %4 = vst.msk [vmem:[#allocation0] sm:$0x1] %vm3, %v2
    %s5 = scalar_lea.vmem %s0, 31
    %v6 = vld [vmem:[%s5] sm:$0x1]
    %7 = vrot.lane.b32.xlu0 %v6, 124
    %v8 = vpop.permute.xlu0 %7
    %vm9 = vcmask 1048544
    %10 = vst.msk [vmem:[#allocation0] sm:$0x1] %vm9, %v8
    %s11 = scalar_lea.vmem %s0, 30
    %v12 = vld [vmem:[%s11] sm:$0x1]
    %13 = vrot.lane.b32.xlu0 %v12, 120
    %v14 = vpop.permute.xlu0 %13
    %vm15 = vcmask 1015744
    %16 = vst.msk [vmem:[#allocation0] sm:$0x1] %vm15, %v14
    %s17 = scalar_lea.vmem %s0, 29
    %v18 = vld [vmem:[%s17] sm:$0x1]
    %19 = vrot.lane.b32.xlu0 %v18, 116
    %v20 = vpop.permute.xlu0 %19
    %vm21 = vcmask 982944
    %22 = vst.msk [vmem:[#allocation0] sm:$0x1] %vm21, %v20
    %s23 = scalar_lea.vmem %s0, 28
    %v24 = vld [vmem:[%s23] sm:$0x1]
    %25 = vrot.lane.b32.xlu0 %v24, 112
    %v26 = vpop.permute.xlu0 %25
    %vm27 = vcmask 950144
    %28 = vst.msk [vmem:[#allocation0] sm:$0x1] %vm27, %v26
    %s29 = scalar_lea.vmem %s0, 27
    %v30 = vld [vmem:[%s29] sm:$0x1]
    %31 = vrot.lane.b32.xlu0 %v30, 108
    %v32 = vpop.permute.xlu0 %31
    %vm33 = vcmask 917344
    %34 = vst.msk [vmem:[#allocation0] sm:$0x1] %vm33, %v32
    %s35 = scalar_lea.vmem %s0, 26
    %v36 = vld [vmem:[%s35] sm:$0x1]
    %37 = vrot.lane.b32.xlu0 %v36, 104
    %v38 = vpop.permute.xlu0 %37
    %vm39 = vcmask 884544
    %40 = vst.msk [vmem:[#allocation0] sm:$0x1] %vm39, %v38
    %s41 = scalar_lea.vmem %s0, 25
    %v42 = vld [vmem:[%s41] sm:$0x1]
    %43 = vrot.lane.b32.xlu0 %v42, 100
    %v44 = vpop.permute.xlu0 %43
    %vm45 = vcmask 851744
    %46 = vst.msk [vmem:[#allocation0] sm:$0x1] %vm45, %v44
    %s47 = scalar_lea.vmem %s0, 24
    %v48 = vld [vmem:[%s47] sm:$0x1]
    %49 = vrot.lane.b32.xlu0 %v48, 96
    %v50 = vpop.permute.xlu0 %49
    %vm51 = vcmask 818944
    %52 = vst.msk [vmem:[#allocation0] sm:$0x1] %vm51, %v50
    %s53 = scalar_lea.vmem %s0, 23
    %v54 = vld [vmem:[%s53] sm:$0x1]
    %55 = vrot.lane.b32.xlu0 %v54, 92
    %v56 = vpop.permute.xlu0 %55
    %vm57 = vcmask 786144
    %58 = vst.msk [vmem:[#allocation0] sm:$0x1] %vm57, %v56
    %s59 = scalar_lea.vmem %s0, 22
    %v60 = vld [vmem:[%s59] sm:$0x1]
    %61 = vrot.lane.b32.xlu0 %v60, 88
    %v62 = vpop.permute.xlu0 %61
    %vm63 = vcmask 753344
    %64 = vst.msk [vmem:[#allocation0] sm:$0x1] %vm63, %v62
    %s65 = scalar_lea.vmem %s0, 21
    %v66 = vld [vmem:[%s65] sm:$0x1]
    %67 = vrot.lane.b32.xlu0 %v66, 84
    %v68 = vpop.permute.xlu0 %67
    %vm69 = vcmask 720544
    %70 = vst.msk [vmem:[#allocation0] sm:$0x1] %vm69, %v68
    %s71 = scalar_lea.vmem %s0, 20
    %v72 = vld [vmem:[%s71] sm:$0x1]
    %73 = vrot.lane.b32.xlu0 %v72, 80
    %v74 = vpop.permute.xlu0 %73
    %vm75 = vcmask 687744
    %76 = vst.msk [vmem:[#allocation0] sm:$0x1] %vm75, %v74
    %s77 = scalar_lea.vmem %s0, 19
    %v78 = vld [vmem:[%s77] sm:$0x1]
    %79 = vrot.lane.b32.xlu0 %v78, 76
    %v80 = vpop.permute.xlu0 %79
    %vm81 = vcmask 654944
    %82 = vst.msk [vmem:[#allocation0] sm:$0x1] %vm81, %v80
    %s83 = scalar_lea.vmem %s0, 18
    %v84 = vld [vmem:[%s83] sm:$0x1]
    %85 = vrot.lane.b32.xlu0 %v84, 72
    %v86 = vpop.permute.xlu0 %85
    %vm87 = vcmask 622144
    %88 = vst.msk [vmem:[#allocation0] sm:$0x1] %vm87, %v86
    %s89 = scalar_lea.vmem %s0, 17
    %v90 = vld [vmem:[%s89] sm:$0x1]
    %91 = vrot.lane.b32.xlu0 %v90, 68
    %v92 = vpop.permute.xlu0 %91
    %vm93 = vcmask 589344
    %94 = vst.msk [vmem:[#allocation0] sm:$0x1] %vm93, %v92
    %s95 = scalar_lea.vmem %s0, 16
    %v96 = vld [vmem:[%s95] sm:$0x1]
    %97 = vrot.lane.b32.xlu0 %v96, 64
    %v98 = vpop.permute.xlu0 %97
    %vm99 = vcmask 556544
    %100 = vst.msk [vmem:[#allocation0] sm:$0x1] %vm99, %v98
    %s101 = scalar_lea.vmem %s0, 15
    %v102 = vld [vmem:[%s101] sm:$0x1]
    %103 = vrot.lane.b32.xlu0 %v102, 60
    %v104 = vpop.permute.xlu0 %103
    %vm105 = vcmask 523744
    %106 = vst.msk [vmem:[#allocation0] sm:$0x1] %vm105, %v104
    %s107 = scalar_lea.vmem %s0, 14
    %v108 = vld [vmem:[%s107] sm:$0x1]
    %109 = vrot.lane.b32.xlu0 %v108, 56
    %v110 = vpop.permute.xlu0 %109
    %vm111 = vcmask 490944
    %112 = vst.msk [vmem:[#allocation0] sm:$0x1] %vm111, %v110
    %s113 = scalar_lea.vmem %s0, 13
    %v114 = vld [vmem:[%s113] sm:$0x1]
    %115 = vrot.lane.b32.xlu0 %v114, 52
    %v116 = vpop.permute.xlu0 %115
    %vm117 = vcmask 458144
    %118 = vst.msk [vmem:[#allocation0] sm:$0x1] %vm117, %v116
    %s119 = scalar_lea.vmem %s0, 12
    %v120 = vld [vmem:[%s119] sm:$0x1]
    %121 = vrot.lane.b32.xlu0 %v120, 48
    %v122 = vpop.permute.xlu0 %121
    %vm123 = vcmask 425344
    %124 = vst.msk [vmem:[#allocation0] sm:$0x1] %vm123, %v122
    %s125 = scalar_lea.vmem %s0, 11
    %v126 = vld [vmem:[%s125] sm:$0x1]
    %127 = vrot.lane.b32.xlu0 %v126, 44
    %v128 = vpop.permute.xlu0 %127
    %vm129 = vcmask 392544
    %130 = vst.msk [vmem:[#allocation0] sm:$0x1] %vm129, %v128
    %s131 = scalar_lea.vmem %s0, 10
    %v132 = vld [vmem:[%s131] sm:$0x1]
    %133 = vrot.lane.b32.xlu0 %v132, 40
    %v134 = vpop.permute.xlu0 %133
    %vm135 = vcmask 359744
    %136 = vst.msk [vmem:[#allocation0] sm:$0x1] %vm135, %v134
    %s137 = scalar_lea.vmem %s0, 9
    %v138 = vld [vmem:[%s137] sm:$0x1]
    %139 = vrot.lane.b32.xlu0 %v138, 36
    %v140 = vpop.permute.xlu0 %139
    %vm141 = vcmask 326944
    %142 = vst.msk [vmem:[#allocation0] sm:$0x1] %vm141, %v140
    %s143 = scalar_lea.vmem %s0, 8
    %v144 = vld [vmem:[%s143] sm:$0x1]
    %145 = vrot.lane.b32.xlu0 %v144, 32
    %v146 = vpop.permute.xlu0 %145
    %vm147 = vcmask 294144
    %148 = vst.msk [vmem:[#allocation0] sm:$0x1] %vm147, %v146
    %s149 = scalar_lea.vmem %s0, 7
    %v150 = vld [vmem:[%s149] sm:$0x1]
    %151 = vrot.lane.b32.xlu0 %v150, 28
    %v152 = vpop.permute.xlu0 %151
    %vm153 = vcmask 261344
    %154 = vst.msk [vmem:[#allocation0] sm:$0x1] %vm153, %v152
    %s155 = scalar_lea.vmem %s0, 6
    %v156 = vld [vmem:[%s155] sm:$0x1]
    %157 = vrot.lane.b32.xlu0 %v156, 24
    %v158 = vpop.permute.xlu0 %157
    %vm159 = vcmask 228544
    %160 = vst.msk [vmem:[#allocation0] sm:$0x1] %vm159, %v158
    %s161 = scalar_lea.vmem %s0, 5
    %v162 = vld [vmem:[%s161] sm:$0x1]
    %163 = vrot.lane.b32.xlu0 %v162, 20
    %v164 = vpop.permute.xlu0 %163
    %vm165 = vcmask 195744
    %166 = vst.msk [vmem:[#allocation0] sm:$0x1] %vm165, %v164
    %s167 = scalar_lea.vmem %s0, 4
    %v168 = vld [vmem:[%s167] sm:$0x1]
    %169 = vrot.lane.b32.xlu0 %v168, 16
    %v170 = vpop.permute.xlu0 %169
    %vm171 = vcmask 162944
    %172 = vst.msk [vmem:[#allocation0] sm:$0x1] %vm171, %v170
    %s173 = scalar_lea.vmem %s0, 3
    %v174 = vld [vmem:[%s173] sm:$0x1]
    %175 = vrot.lane.b32.xlu0 %v174, 12
    %v176 = vpop.permute.xlu0 %175
    %vm177 = vcmask 130144
    %178 = vst.msk [vmem:[#allocation0] sm:$0x1] %vm177, %v176
    %s179 = scalar_lea.vmem %s0, 2
    %v180 = vld [vmem:[%s179] sm:$0x1]
    %181 = vrot.lane.b32.xlu0 %v180, 8
    %v182 = vpop.permute.xlu0 %181
    %vm183 = vcmask 97344
    %184 = vst.msk [vmem:[#allocation0] sm:$0x1] %vm183, %v182
    %s185 = scalar_lea.vmem %s0, 1
    %v186 = vld [vmem:[%s185] sm:$0x1]
    %187 = vrot.lane.b32.xlu0 %v186, 4
    %v188 = vpop.permute.xlu0 %187
    %vm189 = vcmask 64544
    %190 = vst.msk [vmem:[#allocation0] sm:$0x1] %vm189, %v188
    %s192 = sshllo.u32 0, 1
    %v194 = vld [vmem:[#allocation0] sm:%s192]
    %s195 = sshllo.u32 0, 1
    %196 = vst [vmem:[%s1] sm:%s195] %v194

// kernel: _encode_packed.1
$region0: #{_encode_packed.1}
  #allocation0 [shape = 'u32[]', space=smem, size = 0x4, offset = 0x4, fixed_abs, tag = 'smem constant byte address 0x4 - core index']
  #allocation1 [shape = 'u32[144,128]{1,0:T(1,128)}', space=vmem, size = 0x12000, scoped, tag = 'internal scratch']
  %s0 = inlined_call_operand.vmem [shape: s32[1,128], index: 0, kind: input, shape index: {}]
  %s1 = inlined_call_operand.vmem [shape: s8[32,128], index: 1, kind: input, shape index: {}]
  %s2 = inlined_call_operand.hbm [shape: bf16[32,128], index: 2, kind: output, shape index: {}]
  %s3 = sld [smem:[#allocation0]]
  $region18: #{_encode_packed.1} parent=0
    _
  %s5 = ssub.s32 1, %s3
  %s6 = scalar_select 0, %s5, %s3
  $region1: #{_encode_packed.1} parent=0
    #allocation2 [shape = 'u8[8192]{0}', space=vmem, size = 0x2000, scoped, tag = 'output window, operand 0, single buffered']
    #allocation3 [shape = 's32[1]{0}', space=sflag, size = 0x4, scoped, tag = 'scoped memory for _encode_packed.1']
    %7 = vsyncpa [#allocation3], 0
    // Predicated region
    $region2: #{_encode_packed.1} parent=1 // pred_check
      _
    $region3: #{_encode_packed.1} parent=1 // pred_check_branch
      %9 = sbr.rel (0) target = $region5
    $region4: #{_encode_packed.1} parent=1 // pred_region
      _
    $region5: #{_encode_packed.1} parent=1 // pred_fallthru
      _
    // Predicated region
    $region6: #{_encode_packed.1} parent=1 // pred_check
      _
    $region7: #{_encode_packed.1} parent=1 // pred_check_branch
      %11 = sbr.rel (0) target = $region9
    $region8: #{_encode_packed.1} parent=1 // pred_region
      _
    $region9: #{_encode_packed.1} parent=1 // pred_fallthru
      _
    %v13 = vld [vmem:[%s1] sm:$0xff]
    %v14 = vunpack.c.0.s8 %v13
    %v15 = vunpack.c.1.s8 %v13
    %v16 = vunpack.c.2.s8 %v13
    %v17 = vunpack.c.3.s8 %v13
    %v18 = vld [vmem:[%s0] sm:$0x1]
    %v19 = vlaneseq
    %v20 = vshrl.u32 %v19, 7
    %v21 = vsub.s32 0, %v20
    %v22 = vrot.slane %v18, %v21
    %vm23 = vcmp.eq.s32.totalorder %v14, %v22
    %vm24 = vcmp.eq.s32.totalorder %v15, %v22
    %vm25 = vcmp.eq.s32.totalorder %v16, %v22
    %vm26 = vcmp.eq.s32.totalorder %v17, %v22
    %v27 = vsel %vm23, 1, 0
    %v28 = vsel %vm24, 1, 0
    %v29 = vsel %vm25, 1, 0
    %v30 = vsel %vm26, 1, 0
    %v31 = vcvt.s32.f32 %v27
    %v32 = vcvt.s32.f32 %v28
    %v33 = vcvt.s32.f32 %v29
    %v34 = vcvt.s32.f32 %v30
    %v35 = vpack.c.bf16 %v32, %v31
    %v36 = vpack.c.bf16 %v34, %v33
    %vm37 = vcmp.eq.s32.totalorder %v14, 4
    %vm38 = vcmp.eq.s32.totalorder %v15, 4
    %vm39 = vcmp.eq.s32.totalorder %v16, 4
    %vm40 = vcmp.eq.s32.totalorder %v17, 4
    %vm41 = vmpackc.low %vm38, %vm37
    %vm42 = vmpackc.low %vm40, %vm39
    %v43 = vsel %vm41, 1048592000, %v35
    %v44 = vsel %vm42, 1048592000, %v36
    %v47 = vunpack.c.l.b16 %v43
    %v48 = vunpack.c.h.b16 %v43
    %v49 = vunpack.c.l.b16 %v44
    %v50 = vunpack.c.h.b16 %v44
    %v51 = vpack.c.b16 %v47, %v47
    %v52 = vpack.c.b16 %v48, %v48
    %v53 = vpack.c.b16 %v49, %v49
    %v54 = vpack.c.b16 %v50, %v50
    %59 = vst [vmem:[#allocation2] sm:$0xf] %v51
    %60 = vst [vmem:[#allocation2 + $0x4] sm:$0xf] %v52
    %61 = vst [vmem:[#allocation2 + $0x8] sm:$0xf] %v53
    %62 = vst [vmem:[#allocation2 + $0xc] sm:$0xf] %v54
    // Predicated region
    $region10: #{_encode_packed.1} parent=1 // pred_check
      _
    $region11: #{_encode_packed.1} parent=1 // pred_check_branch
      %64 = sbr.rel (0) target = $region13
    $region12: #{_encode_packed.1} parent=1 // pred_region
      %s66 = ssub.s32 256, 256
      %67 = vsyncadd [#allocation3], %s66
      %s68 = sshll.u32 [#allocation2], 4
      %s69 = int_to_ptr.vmem [resolvable:$true] %s68
      %74 = dma.vmem_to_hbm [thread:$0]  %s69, 256, %s2, [#allocation3], 64, 64, 4
    $region13: #{_encode_packed.1} parent=1 // pred_fallthru
      _
    // Predicated region
    $region14: #{_encode_packed.1} parent=1 // pred_check
      _
    $region15: #{_encode_packed.1} parent=1 // pred_check_branch
      %76 = sbr.rel (0) target = $region17
    $region16: #{_encode_packed.1} parent=1 // pred_region
      %77 = dma.done [#allocation3], 256
    $region17: #{_encode_packed.1} parent=1 // pred_fallthru
      _
    %78 = vsyncpa [#allocation3], 1

</llo_original>
